<compile_context>
chip_gen: v5e
topology: v5e:2x2
jax: 0.10.0
libtpu: 0.0.40
codegen_flags: <defaults>
</compile_context>

<pallas_src>
import functools

import jax
import jax.numpy as jnp
from jax.experimental import pallas as pl
from jax.experimental.pallas import tpu as pltpu

ALPHA = 0.5
GAMMA = 0.75
LANE = 128
SUBLANE = 8
# Pad value for the ragged tail of the logits: exp(-|x|) underflows to 0, so
# bce == 0, pt == 1 and the focal term is exactly 0. Safe for f32/bf16/fp16.
_PAD_LOGIT = -1e4


def _focal_loss_kernel(x_ref, t_ref, o_ref, acc_ref, *, alpha, gamma):
    step = pl.program_id(1)

    @pl.when(step == 0)
    def _init():
        acc_ref[...] = jnp.zeros_like(acc_ref)

    x = x_ref[...].astype(jnp.float32)
    t = t_ref[...].astype(jnp.float32)

    # Numerically-stable BCE with logits (== F.binary_cross_entropy_with_logits):
    #   bce = max(x, 0) - x*t + log1p(exp(-|x|))
    z = jnp.exp(-jnp.abs(x))                                   # EUP
    bce = jnp.maximum(x, 0.0) - x * t + jnp.log1p(z)           # VPU + EUP
    pt = jnp.exp(-bce)                                         # EUP
    f_loss = alpha * jnp.power(1.0 - pt, gamma) * bce          # EUP (pow) + VPU

    # Keep the hot-loop reduction VPU-only: fold the tile's groups of 8 rows
    # into the (8, 128) vreg-shaped accumulator; no cross-lane reduce here.
    tr = f_loss.shape[0]
    acc_ref[...] += jnp.sum(f_loss.reshape(tr // SUBLANE, SUBLANE, LANE), axis=0)

    @pl.when(step == pl.num_programs(1) - 1)
    def _finalize():
        o_ref[...] = acc_ref[...].reshape(1, SUBLANE, LANE).astype(o_ref.dtype)


def focal_loss(outputs, targets, *, alpha=ALPHA, gamma=GAMMA,
               tile_rows=2048, num_splits=2):
    assert outputs.shape == targets.shape
    n_valid = outputs.size

    flat_x = outputs.reshape(-1)
    flat_t = targets.reshape(-1)

    # Lane-dense layout: rows of 128 elements, split across num_splits cores.
    rows = -(-n_valid // LANE)
    rows_per_split = -(-rows // num_splits)
    # Clip the row tile to what is actually needed; keep it 8-sublane aligned.
    tr = max(SUBLANE, min(tile_rows, -(-rows_per_split // SUBLANE) * SUBLANE))
    tiles_per_split = -(-rows_per_split // tr)
    padded_rows = num_splits * tiles_per_split * tr

    pad = padded_rows * LANE - n_valid
    if pad:  # static decision; skipped entirely for tile-aligned inputs
        flat_x = jnp.pad(flat_x, (0, pad), constant_values=_PAD_LOGIT)
        flat_t = jnp.pad(flat_t, (0, pad), constant_values=0.0)
    x2 = flat_x.reshape(padded_rows, LANE)
    t2 = flat_t.reshape(padded_rows, LANE)

    kernel = functools.partial(
        _focal_loss_kernel, alpha=float(alpha), gamma=float(gamma)
    )

    in_spec = pl.BlockSpec((tr, LANE), lambda c, i: (c * tiles_per_split + i, 0))
    out_spec = pl.BlockSpec((1, SUBLANE, LANE), lambda c, i: (c, 0, 0))

    partial_sums = pl.pallas_call(
        kernel,
        out_shape=jax.ShapeDtypeStruct((num_splits, SUBLANE, LANE), jnp.float32),
        grid_spec=pltpu.PrefetchScalarGridSpec(
            num_scalar_prefetch=0,
            grid=(num_splits, tiles_per_split),
            in_specs=[in_spec, in_spec],
            out_specs=out_spec,
            scratch_shapes=[pltpu.VMEM((SUBLANE, LANE), jnp.float32)],
        ),
        compiler_params=pltpu.CompilerParams(
            dimension_semantics=("parallel", "arbitrary"),
        ),
    )(x2, t2)

    # Single tiny cross-lane/sublane reduce + mean, done once in JAX.
    return jnp.sum(partial_sums) / jnp.float32(n_valid)


def _focal_loss_ref(outputs, targets, alpha=ALPHA, gamma=GAMMA):
    x = outputs.astype(jnp.float32)
    t = targets.astype(jnp.float32)
    bce = jnp.maximum(x, 0.0) - x * t + jnp.log1p(jnp.exp(-jnp.abs(x)))
    pt = jnp.exp(-bce)
    return jnp.mean(alpha * (1.0 - pt) ** gamma * bce)


if __name__ == "__main__":
    key = jax.random.PRNGKey(0)
    k1, k2 = jax.random.split(key)
    # NCHW-shaped logits and binary targets, e.g. segmentation logits.
    x = jax.random.normal(k1, (2, 4, 16, 16), dtype=jnp.float32)
    t = (jax.random.uniform(k2, (2, 4, 16, 16)) > 0.5).astype(jnp.float32)

    loss = focal_loss(x, t)
    jax.block_until_ready(loss)

    ref = _focal_loss_ref(x, t)
    assert jnp.allclose(loss, ref, rtol=1e-5, atol=1e-6), (loss, ref)
    print("KERNEL_OK")
</pallas_src>

<mosaic_0001>
module attributes {stable_mosaic.version = 11 : i64} {
  func.func @_focal_loss_kernel(%arg0: i32, %arg1: i32, %arg2: memref<8x128xf32, #tpu.memory_space<vmem>>, %arg3: memref<8x128xf32, #tpu.memory_space<vmem>>, %arg4: memref<1x8x128xf32, #tpu.memory_space<vmem>>, %arg5: memref<8x128xf32, #tpu.memory_space<vmem>>) attributes {dimension_semantics = [#tpu.dimension_semantics<parallel>, #tpu.dimension_semantics<arbitrary>], iteration_bounds = array<i64: 2, 1>, scalar_prefetch = 0 : i64, scratch_operands = 1 : i64, tpu.core_type = #tpu.core_type<tc>, window_params = [{transform_indices = @transform_0, window_bounds = array<i64: 8, 128>}, {transform_indices = @transform_1, window_bounds = array<i64: 8, 128>}, {transform_indices = @transform_2, window_bounds = array<i64: 1, 8, 128>}]} {
    %c0_i32 = arith.constant 0 : i32
    %0 = arith.cmpi eq, %arg1, %c0_i32 : i32
    %1 = arith.extui %0 : i1 to i32
    %c0_i32_0 = arith.constant 0 : i32
    %2 = arith.cmpi ne, %1, %c0_i32_0 : i32
    scf.if %2 {
      %cst_16 = arith.constant 0.000000e+00 : f32
      %33 = vector.broadcast %cst_16 : f32 to vector<8x128xf32>
      %c0_17 = arith.constant 0 : index
      %c0_18 = arith.constant 0 : index
      %34 = vector.load %arg5[%c0_17, %c0_18] : memref<8x128xf32, #tpu.memory_space<vmem>>, vector<8x128xf32>
      tpu.vector_store %arg5[%c0_17, %c0_18], %33 {strides = array<i32>} : memref<8x128xf32, #tpu.memory_space<vmem>>, vector<8x128xf32>,
    } else {
    }
    %c0 = arith.constant 0 : index
    %c0_1 = arith.constant 0 : index
    %3 = vector.load %arg2[%c0, %c0_1] : memref<8x128xf32, #tpu.memory_space<vmem>>, vector<8x128xf32>
    %c0_2 = arith.constant 0 : index
    %c0_3 = arith.constant 0 : index
    %4 = vector.load %arg3[%c0_2, %c0_3] : memref<8x128xf32, #tpu.memory_space<vmem>>, vector<8x128xf32>
    %5 = math.absf %3 : vector<8x128xf32>
    %cst = arith.constant 0.000000e+00 : f32
    %6 = vector.broadcast %cst : f32 to vector<8x128xf32>
    %7 = arith.subf %6, %5 : vector<8x128xf32>
    %8 = math.exp %7 : vector<8x128xf32>
    %cst_4 = arith.constant 0.000000e+00 : f32
    %9 = vector.broadcast %cst_4 : f32 to vector<8x128xf32>
    %10 = arith.maximumf %3, %9 : vector<8x128xf32>
    %11 = arith.mulf %3, %4 : vector<8x128xf32>
    %12 = arith.subf %10, %11 : vector<8x128xf32>
    %13 = math.log1p %8 : vector<8x128xf32>
    %14 = arith.addf %12, %13 : vector<8x128xf32>
    %cst_5 = arith.constant 0.000000e+00 : f32
    %15 = vector.broadcast %cst_5 : f32 to vector<8x128xf32>
    %16 = arith.subf %15, %14 : vector<8x128xf32>
    %17 = math.exp %16 : vector<8x128xf32>
    %cst_6 = arith.constant 1.000000e+00 : f32
    %18 = vector.broadcast %cst_6 : f32 to vector<8x128xf32>
    %19 = arith.subf %18, %17 : vector<8x128xf32>
    %cst_7 = arith.constant 7.500000e-01 : f32
    %20 = vector.broadcast %cst_7 : f32 to vector<8x128xf32>
    %21 = math.powf %19, %20 : vector<8x128xf32>
    %cst_8 = arith.constant 5.000000e-01 : f32
    %22 = vector.broadcast %cst_8 : f32 to vector<8x128xf32>
    %23 = arith.mulf %22, %21 : vector<8x128xf32>
    %24 = arith.mulf %23, %14 : vector<8x128xf32>
    %c0_9 = arith.constant 0 : index
    %c0_10 = arith.constant 0 : index
    %25 = vector.load %arg5[%c0_9, %c0_10] : memref<8x128xf32, #tpu.memory_space<vmem>>, vector<8x128xf32>
    %26 = vector.shape_cast %24 : vector<8x128xf32> to vector<1x8x128xf32>
    %cst_11 = arith.constant dense<0.000000e+00> : vector<8x128xf32>
    %27 = vector.multi_reduction <add>, %26, %cst_11 [0] : vector<1x8x128xf32> to vector<8x128xf32>
    %28 = arith.addf %25, %27 : vector<8x128xf32>
    %c0_12 = arith.constant 0 : index
    %c0_13 = arith.constant 0 : index
    %29 = vector.load %arg5[%c0_12, %c0_13] : memref<8x128xf32, #tpu.memory_space<vmem>>, vector<8x128xf32>
    tpu.vector_store %arg5[%c0_12, %c0_13], %28 {strides = array<i32>} : memref<8x128xf32, #tpu.memory_space<vmem>>, vector<8x128xf32>,
    %c0_i32_14 = arith.constant 0 : i32
    %30 = arith.cmpi eq, %arg1, %c0_i32_14 : i32
    %31 = arith.extui %30 : i1 to i32
    %c0_i32_15 = arith.constant 0 : i32
    %32 = arith.cmpi ne, %31, %c0_i32_15 : i32
    scf.if %32 {
      %c0_16 = arith.constant 0 : index
      %c0_17 = arith.constant 0 : index
      %33 = vector.load %arg5[%c0_16, %c0_17] : memref<8x128xf32, #tpu.memory_space<vmem>>, vector<8x128xf32>
      %34 = vector.shape_cast %33 : vector<8x128xf32> to vector<1x8x128xf32>
      %c0_18 = arith.constant 0 : index
      %c0_19 = arith.constant 0 : index
      %c0_20 = arith.constant 0 : index
      %35 = vector.load %arg4[%c0_18, %c0_19, %c0_20] : memref<1x8x128xf32, #tpu.memory_space<vmem>>, vector<1x8x128xf32>
      tpu.vector_store %arg4[%c0_18, %c0_19, %c0_20], %34 {strides = array<i32>} : memref<1x8x128xf32, #tpu.memory_space<vmem>>, vector<1x8x128xf32>,
    } else {
    }
    return
  }
  func.func @transform_0(%arg0: i32, %arg1: i32) -> (i32, i32) {
    %c1_i32 = arith.constant 1 : i32
    %0 = arith.muli %arg0, %c1_i32 : i32
    %1 = arith.addi %0, %arg1 : i32
    %c0_i32 = arith.constant 0 : i32
    %c0_i32_0 = arith.constant 0 : i32
    return %1, %c0_i32 : i32, i32
  }
  func.func @transform_1(%arg0: i32, %arg1: i32) -> (i32, i32) {
    %c1_i32 = arith.constant 1 : i32
    %0 = arith.muli %arg0, %c1_i32 : i32
    %1 = arith.addi %0, %arg1 : i32
    %c0_i32 = arith.constant 0 : i32
    %c0_i32_0 = arith.constant 0 : i32
    return %1, %c0_i32 : i32, i32
  }
  func.func @transform_2(%arg0: i32, %arg1: i32) -> (i32, i32, i32) {
    %c0_i32 = arith.constant 0 : i32
    %c0_i32_0 = arith.constant 0 : i32
    %c0_i32_1 = arith.constant 0 : i32
    return %arg0, %c0_i32, %c0_i32_0 : i32, i32, i32
  }
}

</mosaic_0001>

<llo_original>
// kernel: tpu_custom_call.1
$region0: #{tpu_custom_call.1}
  #allocation0 [shape = 'u32[]', space=smem, size = 0x4, offset = 0x4, fixed_abs, tag = 'smem constant byte address 0x4 - core index']
  #allocation1 [shape = 'u32[72,128]{1,0:T(1,128)}', space=vmem, size = 0x9000, scoped, tag = 'internal scratch']
  #allocation2 [shape = 'f32[8,128]{1,0:T(8,128)}', space=vmem, size = 0x1000, scoped, tag = 'scratch operand']
  %s0 = inlined_call_operand.hbm [shape: f32[16,128], index: 0, kind: input, shape index: {}]
  %s1 = inlined_call_operand.hbm [shape: f32[16,128], index: 1, kind: input, shape index: {}]
  %s2 = inlined_call_operand.hbm [shape: f32[2,8,128], index: 2, kind: output, shape index: {}]
  %s3 = sld [smem:[#allocation0]]
  $region57: #{tpu_custom_call.1} parent=0
    _
  %s5 = ssub.s32 1, %s3
  %s6 = scalar_select 0, %s5, %s3
  $region1: #{tpu_custom_call.1} parent=0
    #allocation3 [shape = 'u8[8192]{0}', space=vmem, size = 0x2000, scoped, tag = 'input window, operand 0']
    #allocation4 [shape = 's32[2]{0}', space=sflag, size = 0x8, scoped, tag = 'scoped memory for tpu_custom_call.1']
    #allocation5 [shape = 's32[2]{0}', space=sflag, size = 0x8, scoped, tag = 'scoped memory for tpu_custom_call.1']
    #allocation6 [shape = 'u8[8192]{0}', space=vmem, size = 0x2000, scoped, tag = 'input window, operand 1']
    #allocation7 [shape = 's32[2]{0}', space=sflag, size = 0x8, scoped, tag = 'scoped memory for tpu_custom_call.1']
    #allocation8 [shape = 'u8[8192]{0}', space=vmem, size = 0x2000, scoped, tag = 'output window, operand 0']
    %7 = vsyncpa [#allocation4], 0
    %s8 = scalar_lea.sflag [#allocation4], 1
    %9 = vsyncpa %s8, 0
    %10 = vsyncpa [#allocation7], 0
    %s11 = scalar_lea.sflag [#allocation7], 1
    %12 = vsyncpa %s11, 0
    %13 = vsyncpa [#allocation5], 0
    %s14 = scalar_lea.sflag [#allocation5], 1
    %15 = vsyncpa %s14, 0
    loop: start=0, step=1, limit=4
    $region2: #{tpu_custom_call.1} parent=1 // loop_pre_header
      _
    $region3: #{tpu_custom_call.1} parent=1 // loop_header
      %s17 = sphi 0, %s21
      %p18 = scmp.ge.s32.totalorder %s17, 4
      %s24 = sphi 0, %s36
      %s25 = sphi 0, %s32
      %s26 = sphi 0, %s24
      %s27 = sphi 0, %s25
      %s28 = sphi 0, %s26
      %s29 = sphi 0, %s27
      %s41 = sphi 0, %s43
      %s44 = sphi 0, %s41
      %s45 = sphi 0, %s44
      %s61 = sphi 0, %s45
      %s69 = sphi 0, %s71
      %s72 = sphi 0, %s69
      %s73 = sphi 0, %s72
      %s89 = sphi 0, %s73
      %s95 = sphi 0, %s97
      %s98 = sphi 0, %s95
      %s99 = sphi 0, %s98
      %s115 = sphi 0, %s99
    $region4: #{tpu_custom_call.1} parent=1 // loop_header_branch
      %20 = sbr.rel (%p18) target = $region8
    $region5: #{tpu_custom_call.1} parent=1 // loop_body
      %s22 = ssub.s32 %s17, 1
      %s23 = ssub.s32 %s17, 2
      %s30 = sadd.s32 1, %s25
      %p31 = scmp.ge.s32.totalorder %s30, 1
      %s32 = scalar_select %p31, 0, %s30
      %s33 = sadd.s32 1, %s24
      %s34 = scalar_select %p31, %s33, %s24
      %p35 = scmp.ge.s32.totalorder %s34, 2
      %s36 = scalar_select %p35, 0, %s34
      %s37 = sadd.s32 %s24, %s25
      %s38 = sadd.s32 %s36, %s32
      %s39 = ssub.s32 %s37, %s38
      %p40 = scmp.eq.s32.totalorder %s39, 0
      %s42 = sadd.s32 %s41, 1
      %s43 = scalar_select %p40, %s41, %s42
      %p46 = pneg %p40
      %p47 = scmp.eq.s32.totalorder %s17, 1
      %p48 = por %p46, %p47
      %p49 = scmp.ne.s32.totalorder %s41, %s44
      %p50 = scmp.eq.s32.totalorder %s17, 0
      %p51 = por %p49, %p50
      %p52 = scmp.ne.s32.totalorder %s41, %s44
      %p53 = scmp.eq.s32.totalorder %s22, 1
      %p54 = por %p52, %p53
      %p55 = scmp.ne.s32.totalorder %s44, %s45
      %p56 = scmp.eq.s32.totalorder %s22, 0
      %p57 = por %p55, %p56
      %p58 = scmp.ne.s32.totalorder %s44, %s45
      %p59 = scmp.eq.s32.totalorder %s23, 1
      %p60 = por %p58, %p59
      %p62 = scmp.ne.s32.totalorder %s45, %s61
      %p63 = scmp.eq.s32.totalorder %s23, 0
      %p64 = por %p62, %p63
      %s65 = sadd.s32 %s24, %s25
      %s66 = sadd.s32 %s36, %s32
      %s67 = ssub.s32 %s65, %s66
      %p68 = scmp.eq.s32.totalorder %s67, 0
      %s70 = sadd.s32 %s69, 1
      %s71 = scalar_select %p68, %s69, %s70
      %p74 = pneg %p68
      %p75 = scmp.eq.s32.totalorder %s17, 1
      %p76 = por %p74, %p75
      %p77 = scmp.ne.s32.totalorder %s69, %s72
      %p78 = scmp.eq.s32.totalorder %s17, 0
      %p79 = por %p77, %p78
      %p80 = scmp.ne.s32.totalorder %s69, %s72
      %p81 = scmp.eq.s32.totalorder %s22, 1
      %p82 = por %p80, %p81
      %p83 = scmp.ne.s32.totalorder %s72, %s73
      %p84 = scmp.eq.s32.totalorder %s22, 0
      %p85 = por %p83, %p84
      %p86 = scmp.ne.s32.totalorder %s72, %s73
      %p87 = scmp.eq.s32.totalorder %s23, 1
      %p88 = por %p86, %p87
      %p90 = scmp.ne.s32.totalorder %s73, %s89
      %p91 = scmp.eq.s32.totalorder %s23, 0
      %p92 = por %p90, %p91
      %s93 = ssub.s32 %s24, %s36
      %p94 = scmp.eq.s32.totalorder %s93, 0
      %s96 = sadd.s32 %s95, 1
      %s97 = scalar_select %p94, %s95, %s96
      %p100 = pneg %p94
      %p101 = scmp.eq.s32.totalorder %s17, 1
      %p102 = por %p100, %p101
      %p103 = scmp.ne.s32.totalorder %s95, %s98
      %p104 = scmp.eq.s32.totalorder %s17, 0
      %p105 = por %p103, %p104
      %p106 = scmp.ne.s32.totalorder %s95, %s98
      %p107 = scmp.eq.s32.totalorder %s22, 1
      %p108 = por %p106, %p107
      %p109 = scmp.ne.s32.totalorder %s98, %s99
      %p110 = scmp.eq.s32.totalorder %s22, 0
      %p111 = por %p109, %p110
      %p112 = scmp.ne.s32.totalorder %s98, %s99
      %p113 = scmp.eq.s32.totalorder %s23, 1
      %p114 = por %p112, %p113
      %p116 = scmp.ne.s32.totalorder %s99, %s115
      %p117 = scmp.eq.s32.totalorder %s23, 0
      %p118 = por %p116, %p117
      %p119 = scmp.le.s32.totalorder 1, %s17
      %p120 = scmp.lt.s32.totalorder %s17, 3
      %p121 = pnand %p119, %p120
      %p122 = pneg %p121
      // Predicated region
      $region9: #{tpu_custom_call.1} parent=5 // pred_check
        _
      $region10: #{tpu_custom_call.1} parent=5 // pred_check_branch
        %124 = sbr.rel (%p121) target = $region12
      $region11: #{tpu_custom_call.1} parent=5 // pred_region
        %s125 = ssub.s32 %s17, 1
      $region12: #{tpu_custom_call.1} parent=5 // pred_fallthru
        _
      %p126 = scmp.lt.s32.totalorder %s17, 2
      // Predicated region
      $region13: #{tpu_custom_call.1} parent=5 // pred_check
        %p127 = pneg %p126
      $region14: #{tpu_custom_call.1} parent=5 // pred_check_branch
        %129 = sbr.rel (%p127) target = $region16
      $region15: #{tpu_custom_call.1} parent=5 // pred_region
        // Predicated region
        $region17: #{tpu_custom_call.1} parent=15 // pred_check
          %p130 = pneg %p51
        $region18: #{tpu_custom_call.1} parent=15 // pred_check_branch
          %132 = sbr.rel (%p130) target = $region20
        $region19: #{tpu_custom_call.1} parent=15 // pred_region
          %s133 = sand.u32 %s41, 1
          %s134 = scalar_lea.sflag [#allocation4], %s133
          %s135 = sand.u32 %s41, 1
          %s136 = smul.addr %s135, 8
          %s137 = scalar_lea.vmem [#allocation3], %s136
          %s138 = sadd.s32 %s24, %s25
          %140 = vsyncadd %s134, 0
          %s141 = smul.addr %s138, 8
          %s142 = scalar_lea.hbm %s0, %s141
          %s144 = sshll.u32 %s142, 4
          %s145 = int_to_ptr.hbm [resolvable:$true] %s144
          %s146 = sshll.u32 %s137, 4
          %s147 = int_to_ptr.vmem [resolvable:$true] %s146
          %149 = dma.hbm_to_vmem [thread:$0]  %s145, 128, %s147, %s134
        $region20: #{tpu_custom_call.1} parent=15 // pred_fallthru
          _
        // Predicated region
        $region21: #{tpu_custom_call.1} parent=15 // pred_check
          %p150 = pneg %p79
        $region22: #{tpu_custom_call.1} parent=15 // pred_check_branch
          %152 = sbr.rel (%p150) target = $region24
        $region23: #{tpu_custom_call.1} parent=15 // pred_region
          %s153 = sand.u32 %s69, 1
          %s154 = scalar_lea.sflag [#allocation7], %s153
          %s155 = sand.u32 %s69, 1
          %s156 = smul.addr %s155, 8
          %s157 = scalar_lea.vmem [#allocation6], %s156
          %s158 = sadd.s32 %s24, %s25
          %160 = vsyncadd %s154, 0
          %s161 = smul.addr %s158, 8
          %s162 = scalar_lea.hbm %s1, %s161
          %s164 = sshll.u32 %s162, 4
          %s165 = int_to_ptr.hbm [resolvable:$true] %s164
          %s166 = sshll.u32 %s157, 4
          %s167 = int_to_ptr.vmem [resolvable:$true] %s166
          %169 = dma.hbm_to_vmem [thread:$0]  %s165, 128, %s167, %s154
        $region24: #{tpu_custom_call.1} parent=15 // pred_fallthru
          _
      $region16: #{tpu_custom_call.1} parent=5 // pred_fallthru
        _
      %p170 = scmp.le.s32.totalorder 1, %s17
      %p171 = scmp.lt.s32.totalorder %s17, 3
      %p172 = pnand %p170, %p171
      %p173 = pneg %p172
      // Predicated region
      $region25: #{tpu_custom_call.1} parent=5 // pred_check
        _
      $region26: #{tpu_custom_call.1} parent=5 // pred_check_branch
        %175 = sbr.rel (%p172) target = $region28
      $region27: #{tpu_custom_call.1} parent=5 // pred_region
        %s176 = ssub.s32 %s17, 1
        %s177 = sand.u32 %s44, 1
        %s178 = scalar_lea.sflag [#allocation4], %s177
        %s179 = sand.u32 %s44, 1
        %s180 = smul.addr %s179, 8
        %s181 = scalar_lea.vmem [#allocation3], %s180
        // Predicated region
        $region29: #{tpu_custom_call.1} parent=27 // pred_check
          %p182 = pneg %p57
        $region30: #{tpu_custom_call.1} parent=27 // pred_check_branch
          %184 = sbr.rel (%p182) target = $region32
        $region31: #{tpu_custom_call.1} parent=27 // pred_region
          %186 = dma.done %s178, 128
        $region32: #{tpu_custom_call.1} parent=27 // pred_fallthru
          _
        %s187 = sand.u32 %s72, 1
        %s188 = scalar_lea.sflag [#allocation7], %s187
        %s189 = sand.u32 %s72, 1
        %s190 = smul.addr %s189, 8
        %s191 = scalar_lea.vmem [#allocation6], %s190
        // Predicated region
        $region33: #{tpu_custom_call.1} parent=27 // pred_check
          %p192 = pneg %p85
        $region34: #{tpu_custom_call.1} parent=27 // pred_check_branch
          %194 = sbr.rel (%p192) target = $region36
        $region35: #{tpu_custom_call.1} parent=27 // pred_region
          %196 = dma.done %s188, 128
        $region36: #{tpu_custom_call.1} parent=27 // pred_fallthru
          _
        %s197 = sand.u32 %s44, 1
        %s198 = scalar_lea.sflag [#allocation4], %s197
        %s199 = sand.u32 %s44, 1
        %s200 = smul.addr %s199, 8
        %s201 = scalar_lea.vmem [#allocation3], %s200
        %p202 = pneg %p57
        %p203 = pneg %p54
        %s204 = sand.u32 %s72, 1
        %s205 = scalar_lea.sflag [#allocation7], %s204
        %s206 = sand.u32 %s72, 1
        %s207 = smul.addr %s206, 8
        %s208 = scalar_lea.vmem [#allocation6], %s207
        %p209 = pneg %p85
        %p210 = pneg %p82
        %p211 = pneg %p111
        %p212 = pneg %p108
        %s213 = sand.u32 %s98, 1
        %s214 = scalar_lea.sflag [#allocation5], %s213
        %s215 = sand.u32 %s98, 1
        %s216 = smul.addr %s215, 8
        %s217 = scalar_lea.vmem [#allocation8], %s216
        %s218 = sadd.s32 %s26, %s27
        %s219 = sadd.s32 %s26, %s27
        %p220 = scmp.eq.s32.totalorder %s27, 0
        // Predicated region
        $region37: #{tpu_custom_call.1} parent=27 // pred_check
          %p221 = pneg %p220
        $region38: #{tpu_custom_call.1} parent=27 // pred_check_branch
          %223 = sbr.rel (%p221) target = $region40
        $region39: #{tpu_custom_call.1} parent=27 // pred_region
          %224 = vst [vmem:[#allocation2] sm:$0xff] 0.0
        $region40: #{tpu_custom_call.1} parent=27 // pred_fallthru
          _
        %v225 = vld [vmem:[%s181] sm:$0xff]
        %v226 = vld [vmem:[%s191] sm:$0xff]
        %v227 = vand.u32 2147483647, %v225
        %v228 = vsub.f32 0.0, %v227
        %v229 = vmul.f32 %v228, 1.442695
        %v230 = vpow.pop %v229
        %v231 = vmax.f32 %v225, 0.0
        %v232 = vmul.f32 %v225, %v226
        %v233 = vsub.f32 %v231, %v232
        %v234 = vadd.f32 %v230, 1.0
        %v235 = vlog2.pop %v234
        %v236 = vmul.f32 %v235, 0.6931472
        %v237 = vmul.f32 -0.5, %v230
        %v238 = vadd.f32 %v237, 1.0
        %v239 = vmul.f32 %v238, %v230
        %v240 = vand.u32 2147483647, %v230
        %vm241 = vcmp.lt.f32.partialorder %v240, 0.0004427343
        %v242 = vsel %vm241, %v239, %v236
        %v243 = vadd.f32 %v233, %v242
        %v244 = vsub.f32 0.0, %v243
        %v245 = vmul.f32 %v244, 1.442695
        %v246 = vpow.pop %v245
        %v247 = vsub.f32 1.0, %v246
        %v248 = vpow.f32 %v247, 0.75
        %v249 = vmul.f32 %v248, 0.5
        %v250 = vmul.f32 %v249, %v243
        %v251 = vld [vmem:[#allocation2] sm:$0xff]
        %v252 = vadd.f32 %v250, 0.0
        %v253 = vadd.f32 %v251, %v252
        %254 = vst [vmem:[#allocation2] sm:$0xff] %v253
        // Predicated region
        $region41: #{tpu_custom_call.1} parent=27 // pred_check
          %p255 = pneg %p220
        $region42: #{tpu_custom_call.1} parent=27 // pred_check_branch
          %257 = sbr.rel (%p255) target = $region44
        $region43: #{tpu_custom_call.1} parent=27 // pred_region
          %v258 = vld [vmem:[#allocation2] sm:$0xff]
          %259 = vst [vmem:[%s217] sm:$0xff] %v258
        $region44: #{tpu_custom_call.1} parent=27 // pred_fallthru
          _
        %s260 = sand.u32 %s98, 1
        %s261 = scalar_lea.sflag [#allocation5], %s260
        %s262 = sand.u32 %s98, 1
        %s263 = smul.addr %s262, 8
        %s264 = scalar_lea.vmem [#allocation8], %s263
        // Predicated region
        $region45: #{tpu_custom_call.1} parent=27 // pred_check
          %p265 = pneg %p108
        $region46: #{tpu_custom_call.1} parent=27 // pred_check_branch
          %267 = sbr.rel (%p265) target = $region48
        $region47: #{tpu_custom_call.1} parent=27 // pred_region
          %269 = vsyncadd %s261, 0
          %s270 = smul.addr %s26, 8
          %s271 = scalar_lea.hbm %s2, %s270
          %s273 = sshll.u32 %s264, 4
          %s274 = int_to_ptr.vmem [resolvable:$true] %s273
          %s275 = sshll.u32 %s271, 4
          %s276 = int_to_ptr.hbm [resolvable:$true] %s275
          %278 = dma.vmem_to_hbm [thread:$0]  %s274, 128, %s276, %s261
        $region48: #{tpu_custom_call.1} parent=27 // pred_fallthru
          _
      $region28: #{tpu_custom_call.1} parent=5 // pred_fallthru
        _
      %p279 = scmp.le.s32.totalorder 2, %s17
      // Predicated region
      $region49: #{tpu_custom_call.1} parent=5 // pred_check
        %p280 = pneg %p279
      $region50: #{tpu_custom_call.1} parent=5 // pred_check_branch
        %282 = sbr.rel (%p280) target = $region52
      $region51: #{tpu_custom_call.1} parent=5 // pred_region
        %s283 = ssub.s32 %s17, 2
        // Predicated region
        $region53: #{tpu_custom_call.1} parent=51 // pred_check
          %p284 = pneg %p114
        $region54: #{tpu_custom_call.1} parent=51 // pred_check_branch
          %286 = sbr.rel (%p284) target = $region56
        $region55: #{tpu_custom_call.1} parent=51 // pred_region
          %s287 = sand.u32 %s99, 1
          %s288 = scalar_lea.sflag [#allocation5], %s287
          %s289 = sand.u32 %s99, 1
          %s290 = smul.addr %s289, 8
          %s291 = scalar_lea.vmem [#allocation8], %s290
          %293 = dma.done %s288, 128
        $region56: #{tpu_custom_call.1} parent=51 // pred_fallthru
          _
      $region52: #{tpu_custom_call.1} parent=5 // pred_fallthru
        _
    $region6: #{tpu_custom_call.1} parent=1 // loop_footer
      %s21 = sadd.s32 1, %s17
    $region7: #{tpu_custom_call.1} parent=1 // loop_footer_branch
      %16 = sbr.rel target = $region3
    $region8: #{tpu_custom_call.1} parent=1 // loop_exit
      _
    %294 = vsyncpa [#allocation4], 1
    %s295 = scalar_lea.sflag [#allocation4], 1
    %296 = vsyncpa %s295, 1
    %297 = vsyncpa [#allocation7], 1
    %s298 = scalar_lea.sflag [#allocation7], 1
    %299 = vsyncpa %s298, 1
    %300 = vsyncpa [#allocation5], 1
    %s301 = scalar_lea.sflag [#allocation5], 1
    %302 = vsyncpa %s301, 1

</llo_original>
